<compile_context>
chip_gen: v5e
topology: v5e:2x2
jax: 0.10.0
libtpu: 0.0.40
codegen_flags: <defaults>
</compile_context>

<pallas_src>
import jax
import jax.numpy as jnp
from jax.experimental import pallas as pl
from jax.experimental.pallas import tpu as pltpu


def _pos_enc_kernel(x_ref, pe_ref, o_ref):
    # x_ref : (TB, TF) tile of the flattened activations
    # pe_ref: (1,  TF) tile of the flattened positional embedding
    # Broadcast add over the row (batch) axis — pure VPU elementwise.
    o_ref[...] = x_ref[...] + pe_ref[...]


def _vmem_capacity_bytes():
    try:
        return int(pltpu.get_tpu_info().vmem_capacity_bytes)
    except Exception:
        # Conservative fallback: v7x per-TC VMEM.
        return 64 * 1024 * 1024


def positional_encoding(x, pos_emb, *, min_pallas_bytes=256 * 1024,
                        max_tb=None, max_tf=None):
    """x: (B, patch_num, d_model); pos_emb: (1, patch_num, d_model)."""
    B, P, D = x.shape
    assert pos_emb.shape == (1, P, D)
    F = P * D
    itemsize = jnp.dtype(x.dtype).itemsize
    total_bytes = B * F * itemsize

    # Tiny inputs: a pallas_call launch + 1-2 step grid costs more than the
    # copy itself; let XLA fuse the add into neighboring ops instead.
    if total_bytes < min_pallas_bytes:
        return x + pos_emb

    # Lane-dense layout (free reshape): trailing axis becomes P*D instead of
    # d_model, which may be < 128 and would force masked partial stores.
    x2 = x.reshape(B, F)
    pe2 = pos_emb.reshape(1, F)

    # Pad F up to a multiple of 128 so every block satisfies the (8, 128)
    # constraint and stores stay unmasked; slice the output back afterwards.
    Fp = ((F + 127) // 128) * 128
    if Fp != F:
        pad = Fp - F
        x2 = jnp.pad(x2, ((0, 0), (0, pad)))
        pe2 = jnp.pad(pe2, ((0, 0), (0, pad)))

    # Generation-aware VMEM budget.  Per-step footprint is roughly
    # 2*(x_tile + out_tile) double-buffered + the pe tile pair.
    cap = _vmem_capacity_bytes()
    budget = min(48 * 1024 * 1024, (cap * 3) // 8)  # 48 MiB (v5e/v6e) / 24 MiB (v7x)
    vmem_limit = min(cap, budget + 8 * 1024 * 1024)

    # Row tile (sublane axis): full batch when small, else a multiple of 8.
    tb = B if B <= 256 else 256
    if max_tb is not None and max_tb < tb:
        tb = max_tb
        if tb < B:
            tb = max(8, (tb // 8) * 8)

    # Column tile (lane axis): multiple of 128, sized from the VMEM budget.
    max_cols = budget // (itemsize * (4 * tb + 2))
    tf = max(128, (max_cols // 128) * 128)
    tf = min(tf, Fp)
    if max_tf is not None:
        tf = max(128, min(tf, (max_tf // 128) * 128))

    # Software pipelining needs >= 2 steps (ideally >= 4 so the read of step
    # i+1 overlaps the writeback of step i-1).  Only force splits when the
    # tensor is big enough that +0.35 us/step is noise.  Prefer splitting the
    # ROW axis: the pe column block then stays identical across consecutive
    # (inner) steps and is never re-fetched, and on v7x both TCs get disjoint
    # lane-dense slabs.
    if total_bytes > 4 * 1024 * 1024:
        def n_steps(tb_, tf_):
            return pl.cdiv(B, tb_) * pl.cdiv(Fp, tf_)
        while n_steps(tb, tf) < 4:
            if tb >= 16 and (tb // 2) % 8 == 0:
                tb //= 2
            elif tf >= 256:
                tf = max(128, ((tf // 2) // 128) * 128)
            else:
                break

    n_col = pl.cdiv(Fp, tf)
    n_row = pl.cdiv(B, tb)
    # Grid order: columns outer (slow), rows inner (fastest).  Consecutive
    # steps keep the same pe block index (0, j), so Pallas skips its re-DMA.
    grid = (n_col, n_row)

    out2 = pl.pallas_call(
        _pos_enc_kernel,
        out_shape=jax.ShapeDtypeStruct((B, Fp), x.dtype),
        grid_spec=pltpu.PrefetchScalarGridSpec(
            num_scalar_prefetch=0,
            grid=grid,
            in_specs=[
                # (TB, TF) tile of x; varies with both grid axes.
                pl.BlockSpec((tb, tf), lambda j, i: (i, j)),
                # (1, TF) tile of pos_emb; constant across the inner row axis.
                pl.BlockSpec((1, tf), lambda j, i: (0, j)),
            ],
            out_specs=pl.BlockSpec((tb, tf), lambda j, i: (i, j)),
        ),
        compiler_params=pltpu.CompilerParams(
            dimension_semantics=("parallel", "parallel"),
            vmem_limit_bytes=vmem_limit,
        ),
    )(x2, pe2)

    if Fp != F:
        out2 = out2[:, :F]
    return out2.reshape(B, P, D)


def _check(key, B, P, D, dtype=jnp.float32, **kw):
    k_x, k_pe = jax.random.split(key)
    x = jax.random.normal(k_x, (B, P, D), dtype=dtype)
    pos_emb = jax.random.normal(k_pe, (1, P, D), dtype=dtype)
    out = jax.block_until_ready(positional_encoding(x, pos_emb, **kw))
    ref = x + pos_emb
    assert out.shape == (B, P, D)
    assert jnp.allclose(out, ref, atol=1e-6, rtol=1e-6)


if __name__ == "__main__":
    key = jax.random.PRNGKey(0)
    k1, k2, k3 = jax.random.split(key, 3)

    # Small shape from the module spec (forced through the Pallas path).
    _check(k1, B=2, P=8, D=32, min_pallas_bytes=0)

    # Non-multiple-of-128 flattened width (exercises the padding fallback).
    _check(k2, B=4, P=7, D=24, min_pallas_bytes=0)

    # Multi-step grid (exercises the swapped grid-axis order / index maps).
    _check(k3, B=16, P=16, D=64, min_pallas_bytes=0, max_tb=8, max_tf=256)

    print("KERNEL_OK")
</pallas_src>

<mosaic_0001>
module attributes {stable_mosaic.version = 11 : i64} {
  func.func @_pos_enc_kernel(%arg0: i32, %arg1: i32, %arg2: memref<2x256xf32, #tpu.memory_space<vmem>>, %arg3: memref<1x256xf32, #tpu.memory_space<vmem>>, %arg4: memref<2x256xf32, #tpu.memory_space<vmem>>) attributes {dimension_semantics = [#tpu.dimension_semantics<parallel>, #tpu.dimension_semantics<parallel>], iteration_bounds = array<i64: 1, 1>, scalar_prefetch = 0 : i64, scratch_operands = 0 : i64, tpu.core_type = #tpu.core_type<tc>, window_params = [{transform_indices = @transform_0, window_bounds = array<i64: 2, 256>}, {transform_indices = @transform_1, window_bounds = array<i64: 1, 256>}, {transform_indices = @transform_2, window_bounds = array<i64: 2, 256>}]} {
    %c0 = arith.constant 0 : index
    %c0_0 = arith.constant 0 : index
    %0 = vector.load %arg2[%c0, %c0_0] : memref<2x256xf32, #tpu.memory_space<vmem>>, vector<2x256xf32>
    %c0_1 = arith.constant 0 : index
    %c0_2 = arith.constant 0 : index
    %1 = vector.load %arg3[%c0_1, %c0_2] : memref<1x256xf32, #tpu.memory_space<vmem>>, vector<1x256xf32>
    %2 = vector.broadcast %1 : vector<1x256xf32> to vector<2x256xf32>
    %3 = arith.addf %0, %2 : vector<2x256xf32>
    %c0_3 = arith.constant 0 : index
    %c0_4 = arith.constant 0 : index
    %4 = vector.load %arg4[%c0_3, %c0_4] : memref<2x256xf32, #tpu.memory_space<vmem>>, vector<2x256xf32>
    tpu.vector_store %arg4[%c0_3, %c0_4], %3 {strides = array<i32>} : memref<2x256xf32, #tpu.memory_space<vmem>>, vector<2x256xf32>,
    return
  }
  func.func @transform_0(%arg0: i32, %arg1: i32) -> (i32, i32) {
    %c0_i32 = arith.constant 0 : i32
    return %arg1, %arg0 : i32, i32
  }
  func.func @transform_1(%arg0: i32, %arg1: i32) -> (i32, i32) {
    %c0_i32 = arith.constant 0 : i32
    %c0_i32_0 = arith.constant 0 : i32
    return %c0_i32, %arg0 : i32, i32
  }
  func.func @transform_2(%arg0: i32, %arg1: i32) -> (i32, i32) {
    %c0_i32 = arith.constant 0 : i32
    return %arg1, %arg0 : i32, i32
  }
}

</mosaic_0001>

<llo_original>
// kernel: tpu_custom_call.1
$region0: #{tpu_custom_call.1}
  #allocation0 [shape = 'u32[]', space=smem, size = 0x4, offset = 0x4, fixed_abs, tag = 'smem constant byte address 0x4 - core index']
  #allocation1 [shape = 'u32[72,128]{1,0:T(1,128)}', space=vmem, size = 0x9000, scoped, tag = 'internal scratch']
  %s0 = inlined_call_operand.hbm [shape: f32[2,256], index: 0, kind: input, shape index: {}]
  %s1 = inlined_call_operand.hbm [shape: f32[1,256], index: 1, kind: input, shape index: {}]
  %s2 = inlined_call_operand.hbm [shape: f32[2,256], index: 2, kind: output, shape index: {}]
  %s3 = sld [smem:[#allocation0]]
  $region26: #{tpu_custom_call.1} parent=0
    _
  %s5 = ssub.s32 1, %s3
  %s6 = scalar_select 0, %s5, %s3
  $region1: #{tpu_custom_call.1} parent=0
    #allocation2 [shape = 'u8[2048]{0}', space=vmem, size = 0x800, scoped, tag = 'input window, operand 0, single buffered']
    #allocation3 [shape = 's32[1]{0}', space=sflag, size = 0x4, scoped, tag = 'scoped memory for tpu_custom_call.1']
    #allocation4 [shape = 's32[1]{0}', space=sflag, size = 0x4, scoped, tag = 'scoped memory for tpu_custom_call.1']
    #allocation5 [shape = 'u8[1024]{0}', space=vmem, size = 0x400, scoped, tag = 'input window, operand 1, single buffered']
    #allocation6 [shape = 's32[1]{0}', space=sflag, size = 0x4, scoped, tag = 'scoped memory for tpu_custom_call.1']
    #allocation7 [shape = 'u8[2048]{0}', space=vmem, size = 0x800, scoped, tag = 'output window, operand 0, single buffered']
    %7 = vsyncpa [#allocation3], 0
    %8 = vsyncpa [#allocation6], 0
    %9 = vsyncpa [#allocation4], 0
    // Predicated region
    $region2: #{tpu_custom_call.1} parent=1 // pred_check
      _
    $region3: #{tpu_custom_call.1} parent=1 // pred_check_branch
      %11 = sbr.rel (0) target = $region5
    $region4: #{tpu_custom_call.1} parent=1 // pred_region
      %13 = vsyncadd [#allocation3], 0
      %s15 = sshll.u32 %s0, 4
      %s16 = int_to_ptr.hbm [resolvable:$true] %s15
      %s17 = sshll.u32 [#allocation2], 4
      %s18 = int_to_ptr.vmem [resolvable:$true] %s17
      %20 = dma.hbm_to_vmem [thread:$0]  %s16, 64, %s18, [#allocation3]
    $region5: #{tpu_custom_call.1} parent=1 // pred_fallthru
      _
    // Predicated region
    $region6: #{tpu_custom_call.1} parent=1 // pred_check
      _
    $region7: #{tpu_custom_call.1} parent=1 // pred_check_branch
      %22 = sbr.rel (0) target = $region9
    $region8: #{tpu_custom_call.1} parent=1 // pred_region
      %24 = vsyncadd [#allocation6], 0
      %s26 = sshll.u32 %s1, 4
      %s27 = int_to_ptr.hbm [resolvable:$true] %s26
      %s28 = sshll.u32 [#allocation5], 4
      %s29 = int_to_ptr.vmem [resolvable:$true] %s28
      %31 = dma.hbm_to_vmem [thread:$0]  %s27, 32, %s29, [#allocation6]
    $region9: #{tpu_custom_call.1} parent=1 // pred_fallthru
      _
    // Predicated region
    $region10: #{tpu_custom_call.1} parent=1 // pred_check
      _
    $region11: #{tpu_custom_call.1} parent=1 // pred_check_branch
      %33 = sbr.rel (0) target = $region13
    $region12: #{tpu_custom_call.1} parent=1 // pred_region
      %35 = dma.done [#allocation3], 64
    $region13: #{tpu_custom_call.1} parent=1 // pred_fallthru
      _
    // Predicated region
    $region14: #{tpu_custom_call.1} parent=1 // pred_check
      _
    $region15: #{tpu_custom_call.1} parent=1 // pred_check_branch
      %37 = sbr.rel (0) target = $region17
    $region16: #{tpu_custom_call.1} parent=1 // pred_region
      %39 = dma.done [#allocation6], 32
    $region17: #{tpu_custom_call.1} parent=1 // pred_fallthru
      _
    %v40 = vld [vmem:[#allocation2] sm:$0xf]
    %v41 = vld [vmem:[#allocation5] sm:$0x3]
    %v43 = vperm.slane %v41, 0
    %v44 = vperm.slane %v41, 1
    %v45 = vrot.slane %v44, 6
    %vm46 = vcmask 1041408
    %v47 = vsel %vm46, %v43, %v45
    %v49 = vadd.f32 %v40, %v47
    %50 = vst [vmem:[#allocation7] sm:$0xf] %v49
    // Predicated region
    $region18: #{tpu_custom_call.1} parent=1 // pred_check
      _
    $region19: #{tpu_custom_call.1} parent=1 // pred_check_branch
      %52 = sbr.rel (0) target = $region21
    $region20: #{tpu_custom_call.1} parent=1 // pred_region
      %54 = vsyncadd [#allocation4], 0
      %s56 = sshll.u32 [#allocation7], 4
      %s57 = int_to_ptr.vmem [resolvable:$true] %s56
      %s58 = sshll.u32 %s2, 4
      %s59 = int_to_ptr.hbm [resolvable:$true] %s58
      %61 = dma.vmem_to_hbm [thread:$0]  %s57, 64, %s59, [#allocation4]
    $region21: #{tpu_custom_call.1} parent=1 // pred_fallthru
      _
    // Predicated region
    $region22: #{tpu_custom_call.1} parent=1 // pred_check
      _
    $region23: #{tpu_custom_call.1} parent=1 // pred_check_branch
      %63 = sbr.rel (0) target = $region25
    $region24: #{tpu_custom_call.1} parent=1 // pred_region
      %65 = dma.done [#allocation4], 64
    $region25: #{tpu_custom_call.1} parent=1 // pred_fallthru
      _
    %66 = vsyncpa [#allocation3], 1
    %67 = vsyncpa [#allocation6], 1
    %68 = vsyncpa [#allocation4], 1

</llo_original>
